<compile_context>
chip_gen: v5e
topology: v5e:2x2
jax: 0.10.0
libtpu: 0.0.40
codegen_flags: <defaults>
</compile_context>

<pallas_src>
import jax
import jax.numpy as jnp
from jax.experimental import pallas as pl
from jax.experimental.pallas import tpu as pltpu


def _round_up(n, m):
    return (n + m - 1) // m * m


def _sigmoid(x):
    # sigmoid(x) == 0.5 * (1 + tanh(x/2)); tanh is a single EUP op whereas
    # jax.nn.sigmoid lowers to exp + reciprocal (2 EUP ops).
    return 0.5 * (1.0 + jnp.tanh(0.5 * x))


def _gru_seq_kernel(gx_ref, h0_ref, wh_ref, bhn_ref, out_ref, h_scr):
    """`time_block` GRU timesteps per grid point; hidden carried in VMEM scratch.

    gx_ref : (Tt, Bb, 3*Hp) f32  hoisted x-projection (+ folded biases) per step
    h0_ref : (Bb, Hp)            initial hidden (zero-padded to Hp lanes)
    wh_ref : (Hp, 3*Hp)          h-side weights [Ur | Ui | Un], gate/row padded
    bhn_ref: (1, Hp)   f32       bh_n only (stays inside resetgate*(.))
    out_ref: (Tt, Bb, Hp)        hidden state after each step of this chunk
    h_scr  : (Bb, Hp)  f32       VMEM carry of the hidden state
    """
    tc = pl.program_id(1)

    # NOTE: the carry is only correct because TIME is the innermost
    # (fastest-varying) grid axis: every batch block runs all of its time
    # chunks back-to-back and the carry is re-initialised here at tc == 0.
    @pl.when(tc == 0)
    def _():
        h_scr[...] = h0_ref[...].astype(jnp.float32)

    hp = h_scr.shape[-1]
    tt = gx_ref.shape[0]
    w = wh_ref[...]
    bh_n = bhn_ref[...].astype(jnp.float32)

    def step(i, h):
        gx = gx_ref[i]                                        # (Bb, 3*Hp) f32
        # Single MXU matmul per step (the x side was hoisted out of the loop);
        # bf16 weights, f32 accumulation, all gate math in f32.
        gh = jnp.dot(h.astype(w.dtype), w,
                     preferred_element_type=jnp.float32)      # (Bb, 3*Hp)
        # 128-lane-aligned static slices: one gate per padded lane block
        # (no XLU cross-lane extraction).
        resetgate = _sigmoid(gx[:, 0 * hp:1 * hp] + gh[:, 0 * hp:1 * hp])
        inputgate = _sigmoid(gx[:, 1 * hp:2 * hp] + gh[:, 1 * hp:2 * hp])
        newgate = jnp.tanh(gx[:, 2 * hp:3 * hp]
                           + resetgate * (gh[:, 2 * hp:3 * hp] + bh_n))
        hy = newgate + inputgate * (h - newgate)
        out_ref[i] = hy.astype(out_ref.dtype)                 # lane-dense store
        return hy

    # Fully unrolled so the LLO scheduler can overlap the VPU/EUP gate math of
    # step i with the MXU matmul of step i+1.
    h_scr[...] = jax.lax.fori_loop(0, tt, step, h_scr[...], unroll=True)


def gru_sequence(xs, h0, wx, bx, wh, bh, *, block_b=None, time_block=8,
                 weight_dtype=jnp.bfloat16, single_buffer_weights=False):
    """Run T GRU steps with the recurrence inside a single pallas_call.

    xs : (T, B, D)   inputs per step
    h0 : (B, H)      initial hidden
    wx : (3H, D), bx : (3H,)   -- nn.Linear x2h (out_features, in_features)
    wh : (3H, H), bh : (3H,)   -- nn.Linear h2h
    returns (T, B, H) hidden states (dtype = h0.dtype)
    """
    T, B, D = xs.shape
    H = h0.shape[-1]
    assert wx.shape == (3 * H, D) and wh.shape == (3 * H, H)
    assert bx.shape == (3 * H,) and bh.shape == (3 * H,)
    Hp = _round_up(H, 128)          # pad each gate to a full 128-lane block
    f32 = jnp.float32

    def split3(w):                  # (3H, K) -> three (K, H) transposed blocks
        return [w[g * H:(g + 1) * H].T for g in range(3)]

    wx_r, wx_i, wx_n = split3(wx)
    wh_r, wh_i, wh_n = split3(wh)
    bx_r, bx_i, bx_n = bx[:H], bx[H:2 * H], bx[2 * H:]
    bh_r, bh_i, bh_n = bh[:H], bh[H:2 * H], bh[2 * H:]

    pad_cols = lambda w: jnp.pad(w, ((0, 0), (0, Hp - H)))
    pad_vec = lambda v: jnp.pad(v, (0, Hp - H))

    # ---- hoisted x-projection (time-independent, done once in the wrapper) --
    # Biases: bx+bh folded for the r/i gates; bx only for the n gate
    # (bh_n must stay inside resetgate*(.) to match PyTorch semantics).
    wx_all = jnp.concatenate(
        [pad_cols(wx_r), pad_cols(wx_i), pad_cols(wx_n)], axis=1)      # (D, 3Hp)
    bx_all = jnp.concatenate(
        [pad_vec(bx_r + bh_r), pad_vec(bx_i + bh_i), pad_vec(bx_n)]
    ).astype(f32).reshape(1, 3 * Hp)

    if weight_dtype is not None:
        wx_all = wx_all.astype(weight_dtype)
        xs_cast = xs.astype(weight_dtype)
    else:
        xs_cast = xs
    gx = jnp.dot(xs_cast.reshape(T * B, D), wx_all,
                 preferred_element_type=f32).reshape(T, B, 3 * Hp) + bx_all
    # gx stays f32: it feeds the f32 gate math directly.

    # ---- h-side weights (resident in VMEM across the whole recurrence) ------
    wh_all = jnp.concatenate(
        [pad_cols(wh_r), pad_cols(wh_i), pad_cols(wh_n)], axis=1)      # (H, 3Hp)
    wh_all = jnp.pad(wh_all, ((0, Hp - H), (0, 0)))                    # (Hp, 3Hp)
    if weight_dtype is not None:
        wh_all = wh_all.astype(weight_dtype)
    bh_n_row = pad_vec(bh_n).astype(f32).reshape(1, Hp)

    h0p = jnp.pad(h0, ((0, 0), (0, Hp - H)))                           # (B, Hp)

    # ---- batch blocking ------------------------------------------------------
    if block_b is None:
        b8 = _round_up(B, 8)
        # vreg-pressure cap: gx and gh are each (Bb, 3*Hp) f32 live at once.
        cap = max(8, (64 * 128 // Hp) // 8 * 8)
        if b8 >= 16:
            # >= 2 batch blocks so the "parallel" axis can feed v7x's 2nd TC.
            block_b = min(_round_up(-(-b8 // 2), 8), cap)
        else:
            block_b = min(b8, cap)
    Bp = _round_up(B, block_b)
    nb = Bp // block_b

    # ---- time chunking -------------------------------------------------------
    Tt = max(1, min(time_block, T))
    Tp = _round_up(T, Tt)
    nt = Tp // Tt

    # Zero-pad batch/time so no edge masking is relied upon; padded timesteps
    # come after all real ones (causal recurrence), padded rows are independent.
    gx = jnp.pad(gx, ((0, Tp - T), (0, Bp - B), (0, 0)))
    h0p = jnp.pad(h0p, ((0, Bp - B), (0, 0)))

    # ---- VMEM budget ---------------------------------------------------------
    itemsize = lambda d: jnp.dtype(d).itemsize
    est = 2 * (Tt * block_b * 3 * Hp * 4                      # gx blocks (f32)
               + Tt * block_b * Hp * itemsize(h0.dtype)       # out blocks
               + block_b * Hp * itemsize(h0.dtype)            # h0 block
               + Hp * 3 * Hp * itemsize(wh_all.dtype)         # resident wh
               + Hp * 4)                                      # bh_n
    est += block_b * Hp * 4                                   # f32 carry scratch
    vmem_limit = int(min(max(2 * est, 32 << 20), 100 << 20))

    wh_spec_kwargs = {}
    if single_buffer_weights:
        # v7x (64 MiB VMEM/TC): skip double-buffering the constant-index weights.
        wh_spec_kwargs = dict(pipeline_mode=pl.Buffered(1))

    out = pl.pallas_call(
        _gru_seq_kernel,
        out_shape=jax.ShapeDtypeStruct((Tp, Bp, Hp), h0.dtype),
        grid_spec=pltpu.PrefetchScalarGridSpec(
            num_scalar_prefetch=0,
            grid=(nb, nt),                   # batch (parallel), time (recurrent)
            in_specs=[
                pl.BlockSpec((Tt, block_b, 3 * Hp), lambda b, t: (t, b, 0)),
                pl.BlockSpec((block_b, Hp), lambda b, t: (b, 0)),
                pl.BlockSpec((Hp, 3 * Hp), lambda b, t: (0, 0),
                             **wh_spec_kwargs),               # resident weights
                pl.BlockSpec((1, Hp), lambda b, t: (0, 0)),   # resident bh_n
            ],
            out_specs=pl.BlockSpec((Tt, block_b, Hp), lambda b, t: (t, b, 0)),
            scratch_shapes=[pltpu.VMEM((block_b, Hp), jnp.float32)],
        ),
        compiler_params=pltpu.CompilerParams(
            dimension_semantics=("parallel", "arbitrary"),
            vmem_limit_bytes=vmem_limit),
    )(gx, h0p, wh_all, bh_n_row)

    # TODO(synk): for tiny H with very large T*B, the Hp-padded output adds
    # ~Hp/H x HBM write traffic; either require lane-aligned H at the model
    # level or emit only the final hidden state when all T states aren't needed.
    # TODO(synk): for D/H >= ~1536 (bf16) re-tile the resident (Hp, 3*Hp)
    # weights over the gate/N axis (or K-tile with a partial-sum accumulator)
    # to stay inside v7x's 64 MiB VMEM.
    return out[:T, :B, :H]


def gru_cell(x, hidden, wx, bx, wh, bh, **kwargs):
    """Module-faithful GRUCell.forward (single step) — T=1 of gru_sequence."""
    x2 = x.reshape(-1, x.shape[1])            # mimic x.view(-1, x.size(1))
    hs = gru_sequence(x2[None], hidden, wx, bx, wh, bh, **kwargs)
    return hs[0]


def _reference_gru_cell(x, hidden, wx, bx, wh, bh):
    """Pure-JAX reference matching the PyTorch forward."""
    gate_x = x @ wx.T + bx
    gate_h = hidden @ wh.T + bh
    H = hidden.shape[1]
    i_r, i_i, i_n = gate_x[:, :H], gate_x[:, H:2 * H], gate_x[:, 2 * H:]
    h_r, h_i, h_n = gate_h[:, :H], gate_h[:, H:2 * H], gate_h[:, 2 * H:]
    resetgate = jax.nn.sigmoid(i_r + h_r)
    inputgate = jax.nn.sigmoid(i_i + h_i)
    newgate = jnp.tanh(i_n + resetgate * h_n)
    return newgate + inputgate * (hidden - newgate)


if __name__ == "__main__":
    key = jax.random.PRNGKey(0)
    k_x, k_h, k_wx, k_bx, k_wh, k_bh, k_xs = jax.random.split(key, 7)

    batch = 8
    input_size = 16
    mp_hidden_size = 32
    seq_len = 8

    # reset_parameters(): U(-0.1, 0.1)
    wx = jax.random.uniform(k_wx, (3 * mp_hidden_size, input_size),
                            minval=-0.1, maxval=0.1, dtype=jnp.float32)
    bx = jax.random.uniform(k_bx, (3 * mp_hidden_size,),
                            minval=-0.1, maxval=0.1, dtype=jnp.float32)
    wh = jax.random.uniform(k_wh, (3 * mp_hidden_size, mp_hidden_size),
                            minval=-0.1, maxval=0.1, dtype=jnp.float32)
    bh = jax.random.uniform(k_bh, (3 * mp_hidden_size,),
                            minval=-0.1, maxval=0.1, dtype=jnp.float32)

    x = jax.random.normal(k_x, (batch, input_size), dtype=jnp.float32)
    hidden = jax.random.normal(k_h, (batch, mp_hidden_size), dtype=jnp.float32)

    # --- single-step forward (the original module's semantics), f32 weights ---
    hy = jax.block_until_ready(
        gru_cell(x, hidden, wx, bx, wh, bh, weight_dtype=jnp.float32))
    ref = _reference_gru_cell(x, hidden, wx, bx, wh, bh)
    assert hy.shape == (batch, mp_hidden_size)
    assert hy.dtype == hidden.dtype
    assert jnp.allclose(hy, ref, atol=1e-5, rtol=1e-5), "single-step mismatch"

    # --- multi-step recurrence fully inside one kernel, f32 path --------------
    xs = jax.random.normal(k_xs, (seq_len, batch, input_size), dtype=jnp.float32)
    hs32 = jax.block_until_ready(
        gru_sequence(xs, hidden, wx, bx, wh, bh, weight_dtype=jnp.float32))

    def _step(h, x_t):
        h2 = _reference_gru_cell(x_t, h, wx, bx, wh, bh)
        return h2, h2

    _, hs_ref = jax.lax.scan(_step, hidden, xs)
    assert hs32.shape == (seq_len, batch, mp_hidden_size)
    assert jnp.allclose(hs32, hs_ref, atol=1e-5, rtol=1e-5), "sequence mismatch"

    # --- default bf16-weight MXU path (looser tolerance: bf16 rounding
    #     accumulates over T steps; accumulation / gate math remain f32) -------
    hs_bf16 = jax.block_until_ready(gru_sequence(xs, hidden, wx, bx, wh, bh))
    assert hs_bf16.shape == (seq_len, batch, mp_hidden_size)
    assert jnp.allclose(hs_bf16, hs_ref, atol=5e-2, rtol=5e-2), "bf16 mismatch"

    print("KERNEL_OK")
</pallas_src>

<mosaic_0001>
module attributes {stable_mosaic.version = 11 : i64} {
  func.func @_gru_seq_kernel(%arg0: i32, %arg1: i32, %arg2: memref<1x8x384xf32, #tpu.memory_space<vmem>>, %arg3: memref<8x128xf32, #tpu.memory_space<vmem>>, %arg4: memref<128x384xf32, #tpu.memory_space<vmem>>, %arg5: memref<1x128xf32, #tpu.memory_space<vmem>>, %arg6: memref<1x8x128xf32, #tpu.memory_space<vmem>>, %arg7: memref<8x128xf32, #tpu.memory_space<vmem>>) attributes {dimension_semantics = [#tpu.dimension_semantics<parallel>, #tpu.dimension_semantics<arbitrary>], iteration_bounds = array<i64: 1, 1>, scalar_prefetch = 0 : i64, scratch_operands = 1 : i64, tpu.core_type = #tpu.core_type<tc>, window_params = [{transform_indices = @transform_0, window_bounds = array<i64: 1, 8, 384>}, {transform_indices = @transform_1, window_bounds = array<i64: 8, 128>}, {pipeline_mode = #tpu.pipeline_mode<synchronous>, transform_indices = @transform_2, window_bounds = array<i64: 128, 384>}, {pipeline_mode = #tpu.pipeline_mode<synchronous>, transform_indices = @transform_3, window_bounds = array<i64: 1, 128>}, {transform_indices = @transform_4, window_bounds = array<i64: 1, 8, 128>}]} {
    %c0_i32 = arith.constant 0 : i32
    %0 = arith.cmpi eq, %arg1, %c0_i32 : i32
    %1 = arith.extui %0 : i1 to i32
    %c0_i32_0 = arith.constant 0 : i32
    %2 = arith.cmpi ne, %1, %c0_i32_0 : i32
    scf.if %2 {
      %c0_19 = arith.constant 0 : index
      %c0_20 = arith.constant 0 : index
      %45 = vector.load %arg3[%c0_19, %c0_20] : memref<8x128xf32, #tpu.memory_space<vmem>>, vector<8x128xf32>
      %c0_21 = arith.constant 0 : index
      %c0_22 = arith.constant 0 : index
      %46 = vector.load %arg7[%c0_21, %c0_22] : memref<8x128xf32, #tpu.memory_space<vmem>>, vector<8x128xf32>
      tpu.vector_store %arg7[%c0_21, %c0_22], %45 {strides = array<i32>} : memref<8x128xf32, #tpu.memory_space<vmem>>, vector<8x128xf32>,
    } else {
    }
    %c0 = arith.constant 0 : index
    %c0_1 = arith.constant 0 : index
    %3 = vector.load %arg4[%c0, %c0_1] : memref<128x384xf32, #tpu.memory_space<vmem>>, vector<128x384xf32>
    %c0_2 = arith.constant 0 : index
    %c0_3 = arith.constant 0 : index
    %4 = vector.load %arg5[%c0_2, %c0_3] : memref<1x128xf32, #tpu.memory_space<vmem>>, vector<1x128xf32>
    %c0_4 = arith.constant 0 : index
    %c0_5 = arith.constant 0 : index
    %5 = vector.load %arg7[%c0_4, %c0_5] : memref<8x128xf32, #tpu.memory_space<vmem>>, vector<8x128xf32>
    %c0_i32_6 = arith.constant 0 : i32
    %6 = arith.index_cast %c0_i32_6 : i32 to index
    %c0_7 = arith.constant 0 : index
    %c0_8 = arith.constant 0 : index
    %7 = vector.load %arg2[%6, %c0_7, %c0_8] : memref<1x8x384xf32, #tpu.memory_space<vmem>>, vector<1x8x384xf32>
    %8 = vector.shape_cast %7 : vector<1x8x384xf32> to vector<8x384xf32>
    %cst = arith.constant dense<0.000000e+00> : vector<8x384xf32>
    %9 = tpu.matmul %5, %3, %cst {dimension_numbers = #tpu.dot_dimension_numbers<[1], [0], [0], [1], [0, 0, 1, 1], [], []>} : vector<8x128xf32>, vector<128x384xf32>, vector<8x384xf32> -> vector<8x384xf32>
    %10 = vector.extract_strided_slice %8 {offsets = [0, 0], sizes = [8, 128], strides = [1, 1]} : vector<8x384xf32> to vector<8x128xf32>
    %11 = vector.extract_strided_slice %9 {offsets = [0, 0], sizes = [8, 128], strides = [1, 1]} : vector<8x384xf32> to vector<8x128xf32>
    %12 = arith.addf %10, %11 : vector<8x128xf32>
    %cst_9 = arith.constant 5.000000e-01 : f32
    %13 = vector.broadcast %cst_9 : f32 to vector<8x128xf32>
    %14 = arith.mulf %13, %12 : vector<8x128xf32>
    %15 = math.tanh %14 : vector<8x128xf32>
    %cst_10 = arith.constant 1.000000e+00 : f32
    %16 = vector.broadcast %cst_10 : f32 to vector<8x128xf32>
    %17 = arith.addf %16, %15 : vector<8x128xf32>
    %cst_11 = arith.constant 5.000000e-01 : f32
    %18 = vector.broadcast %cst_11 : f32 to vector<8x128xf32>
    %19 = arith.mulf %18, %17 : vector<8x128xf32>
    %20 = vector.extract_strided_slice %8 {offsets = [0, 128], sizes = [8, 128], strides = [1, 1]} : vector<8x384xf32> to vector<8x128xf32>
    %21 = vector.extract_strided_slice %9 {offsets = [0, 128], sizes = [8, 128], strides = [1, 1]} : vector<8x384xf32> to vector<8x128xf32>
    %22 = arith.addf %20, %21 : vector<8x128xf32>
    %cst_12 = arith.constant 5.000000e-01 : f32
    %23 = vector.broadcast %cst_12 : f32 to vector<8x128xf32>
    %24 = arith.mulf %23, %22 : vector<8x128xf32>
    %25 = math.tanh %24 : vector<8x128xf32>
    %cst_13 = arith.constant 1.000000e+00 : f32
    %26 = vector.broadcast %cst_13 : f32 to vector<8x128xf32>
    %27 = arith.addf %26, %25 : vector<8x128xf32>
    %cst_14 = arith.constant 5.000000e-01 : f32
    %28 = vector.broadcast %cst_14 : f32 to vector<8x128xf32>
    %29 = arith.mulf %28, %27 : vector<8x128xf32>
    %30 = vector.extract_strided_slice %8 {offsets = [0, 256], sizes = [8, 128], strides = [1, 1]} : vector<8x384xf32> to vector<8x128xf32>
    %31 = vector.extract_strided_slice %9 {offsets = [0, 256], sizes = [8, 128], strides = [1, 1]} : vector<8x384xf32> to vector<8x128xf32>
    %32 = vector.broadcast %4 : vector<1x128xf32> to vector<8x128xf32>
    %33 = arith.addf %31, %32 : vector<8x128xf32>
    %34 = arith.mulf %19, %33 : vector<8x128xf32>
    %35 = arith.addf %30, %34 : vector<8x128xf32>
    %36 = math.tanh %35 : vector<8x128xf32>
    %37 = arith.subf %5, %36 : vector<8x128xf32>
    %38 = arith.mulf %29, %37 : vector<8x128xf32>
    %39 = arith.addf %36, %38 : vector<8x128xf32>
    %40 = arith.index_cast %c0_i32_6 : i32 to index
    %c0_15 = arith.constant 0 : index
    %c0_16 = arith.constant 0 : index
    %41 = vector.load %arg6[%40, %c0_15, %c0_16] : memref<1x8x128xf32, #tpu.memory_space<vmem>>, vector<1x8x128xf32>
    %42 = vector.shape_cast %41 : vector<1x8x128xf32> to vector<8x128xf32>
    %43 = vector.shape_cast %39 : vector<8x128xf32> to vector<1x8x128xf32>
    tpu.vector_store %arg6[%40, %c0_15, %c0_16], %43 {strides = array<i32>} : memref<1x8x128xf32, #tpu.memory_space<vmem>>, vector<1x8x128xf32>,
    %c1_i32 = arith.constant 1 : i32
    %c0_17 = arith.constant 0 : index
    %c0_18 = arith.constant 0 : index
    %44 = vector.load %arg7[%c0_17, %c0_18] : memref<8x128xf32, #tpu.memory_space<vmem>>, vector<8x128xf32>
    tpu.vector_store %arg7[%c0_17, %c0_18], %39 {strides = array<i32>} : memref<8x128xf32, #tpu.memory_space<vmem>>, vector<8x128xf32>,
    return
  }
  func.func @transform_0(%arg0: i32, %arg1: i32) -> (i32, i32, i32) {
    %c0_i32 = arith.constant 0 : i32
    %c0_i32_0 = arith.constant 0 : i32
    return %arg1, %arg0, %c0_i32 : i32, i32, i32
  }
  func.func @transform_1(%arg0: i32, %arg1: i32) -> (i32, i32) {
    %c0_i32 = arith.constant 0 : i32
    %c0_i32_0 = arith.constant 0 : i32
    return %arg0, %c0_i32 : i32, i32
  }
  func.func @transform_2(%arg0: i32, %arg1: i32) -> (i32, i32) {
    %c0_i32 = arith.constant 0 : i32
    %c0_i32_0 = arith.constant 0 : i32
    %c0_i32_1 = arith.constant 0 : i32
    return %c0_i32, %c0_i32_0 : i32, i32
  }
  func.func @transform_3(%arg0: i32, %arg1: i32) -> (i32, i32) {
    %c0_i32 = arith.constant 0 : i32
    %c0_i32_0 = arith.constant 0 : i32
    %c0_i32_1 = arith.constant 0 : i32
    return %c0_i32, %c0_i32_0 : i32, i32
  }
  func.func @transform_4(%arg0: i32, %arg1: i32) -> (i32, i32, i32) {
    %c0_i32 = arith.constant 0 : i32
    %c0_i32_0 = arith.constant 0 : i32
    return %arg1, %arg0, %c0_i32 : i32, i32, i32
  }
}

</mosaic_0001>

<llo_original>
// kernel: tpu_custom_call.1
$region0: #{tpu_custom_call.1}
  #allocation0 [shape = 'u32[]', space=smem, size = 0x4, offset = 0x4, fixed_abs, tag = 'smem constant byte address 0x4 - core index']
  #allocation1 [shape = 'u32[72,128]{1,0:T(1,128)}', space=vmem, size = 0x9000, scoped, tag = 'internal scratch']
  #allocation2 [shape = 'f32[8,128]{1,0:T(8,128)}', space=vmem, size = 0x1000, scoped, tag = 'scratch operand']
  %s0 = inlined_call_operand.hbm [shape: f32[1,8,384], index: 0, kind: input, shape index: {}]
  %s1 = inlined_call_operand.hbm [shape: f32[8,128], index: 1, kind: input, shape index: {}]
  %s2 = inlined_call_operand.hbm [shape: f32[128,384], index: 2, kind: input, shape index: {}]
  %s3 = inlined_call_operand.vmem [shape: f32[1,128], index: 3, kind: input, shape index: {}]
  %s4 = inlined_call_operand.hbm [shape: f32[1,8,128], index: 4, kind: output, shape index: {}]
  %s5 = sld [smem:[#allocation0]]
  $region42: #{tpu_custom_call.1} parent=0
    _
  %s7 = ssub.s32 1, %s5
  %s8 = scalar_select 0, %s7, %s5
  $region1: #{tpu_custom_call.1} parent=0
    #allocation3 [shape = 'u8[12288]{0}', space=vmem, size = 0x3000, scoped, tag = 'input window, operand 0, single buffered']
    #allocation4 [shape = 's32[1]{0}', space=sflag, size = 0x4, scoped, tag = 'scoped memory for tpu_custom_call.1']
    #allocation5 [shape = 's32[1]{0}', space=sflag, size = 0x4, scoped, tag = 'scoped memory for tpu_custom_call.1']
    #allocation6 [shape = 'u8[4096]{0}', space=vmem, size = 0x1000, scoped, tag = 'input window, operand 1, single buffered']
    #allocation7 [shape = 's32[1]{0}', space=sflag, size = 0x4, scoped, tag = 'scoped memory for tpu_custom_call.1']
    #allocation8 [shape = 'u8[196608]{0}', space=vmem, size = 0x30000, scoped, tag = 'input window, operand 2, single buffered']
    #allocation9 [shape = 'u8[4096]{0}', space=vmem, size = 0x1000, scoped, tag = 'output window, operand 0, single buffered']
    %9 = vsyncpa [#allocation4], 0
    %10 = vsyncpa [#allocation7], 0
    %11 = vsyncpa [#allocation5], 0
    // Predicated region
    $region2: #{tpu_custom_call.1} parent=1 // pred_check
      _
    $region3: #{tpu_custom_call.1} parent=1 // pred_check_branch
      %13 = sbr.rel (0) target = $region5
    $region4: #{tpu_custom_call.1} parent=1 // pred_region
      %15 = vsyncadd [#allocation4], 0
      %s17 = sshll.u32 %s0, 4
      %s18 = int_to_ptr.hbm [resolvable:$true] %s17
      %s19 = sshll.u32 [#allocation3], 4
      %s20 = int_to_ptr.vmem [resolvable:$true] %s19
      %22 = dma.hbm_to_vmem [thread:$0]  %s18, 384, %s20, [#allocation4]
    $region5: #{tpu_custom_call.1} parent=1 // pred_fallthru
      _
    // Predicated region
    $region6: #{tpu_custom_call.1} parent=1 // pred_check
      _
    $region7: #{tpu_custom_call.1} parent=1 // pred_check_branch
      %24 = sbr.rel (0) target = $region9
    $region8: #{tpu_custom_call.1} parent=1 // pred_region
      %26 = vsyncadd [#allocation7], 0
      %s28 = sshll.u32 %s1, 4
      %s29 = int_to_ptr.hbm [resolvable:$true] %s28
      %s30 = sshll.u32 [#allocation6], 4
      %s31 = int_to_ptr.vmem [resolvable:$true] %s30
      %33 = dma.hbm_to_vmem [thread:$0]  %s29, 128, %s31, [#allocation7]
    $region9: #{tpu_custom_call.1} parent=1 // pred_fallthru
      _
    // Predicated region
    $region10: #{tpu_custom_call.1} parent=1 // pred_check
      _
    $region11: #{tpu_custom_call.1} parent=1 // pred_check_branch
      %35 = sbr.rel (0) target = $region13
    $region12: #{tpu_custom_call.1} parent=1 // pred_region
      %37 = vsyncadd [#allocation7], 0
      %s38 = sshll.u32 %s2, 4
      %s39 = int_to_ptr.hbm [resolvable:$true] %s38
      %s40 = sshll.u32 [#allocation8], 4
      %s41 = int_to_ptr.vmem [resolvable:$true] %s40
      %46 = dma.hbm_to_vmem [thread:$0]  %s39, 6144, %s41, [#allocation7], 384, 384, 24
    $region13: #{tpu_custom_call.1} parent=1 // pred_fallthru
      _
    // Predicated region
    $region14: #{tpu_custom_call.1} parent=1 // pred_check
      _
    $region15: #{tpu_custom_call.1} parent=1 // pred_check_branch
      %48 = sbr.rel (0) target = $region17
    $region16: #{tpu_custom_call.1} parent=1 // pred_region
      _
    $region17: #{tpu_custom_call.1} parent=1 // pred_fallthru
      _
    // Predicated region
    $region18: #{tpu_custom_call.1} parent=1 // pred_check
      _
    $region19: #{tpu_custom_call.1} parent=1 // pred_check_branch
      %50 = sbr.rel (0) target = $region21
    $region20: #{tpu_custom_call.1} parent=1 // pred_region
      %52 = dma.done [#allocation4], 384
    $region21: #{tpu_custom_call.1} parent=1 // pred_fallthru
      _
    // Predicated region
    $region22: #{tpu_custom_call.1} parent=1 // pred_check
      _
    $region23: #{tpu_custom_call.1} parent=1 // pred_check_branch
      %54 = sbr.rel (0) target = $region25
    $region24: #{tpu_custom_call.1} parent=1 // pred_region
      %56 = dma.done [#allocation7], 128
    $region25: #{tpu_custom_call.1} parent=1 // pred_fallthru
      _
    // Predicated region
    $region26: #{tpu_custom_call.1} parent=1 // pred_check
      _
    $region27: #{tpu_custom_call.1} parent=1 // pred_check_branch
      %58 = sbr.rel (0) target = $region29
    $region28: #{tpu_custom_call.1} parent=1 // pred_region
      %60 = dma.done [#allocation7], 6144
    $region29: #{tpu_custom_call.1} parent=1 // pred_fallthru
      _
    %p61 = scmp.eq.s32.totalorder 0, 0
    // Predicated region
    $region30: #{tpu_custom_call.1} parent=1 // pred_check
      %p62 = pneg %p61
    $region31: #{tpu_custom_call.1} parent=1 // pred_check_branch
      %64 = sbr.rel (%p62) target = $region33
    $region32: #{tpu_custom_call.1} parent=1 // pred_region
      %v65 = vld [vmem:[#allocation6] sm:$0xff]
      %66 = vst [vmem:[#allocation2] sm:$0xff] %v65
    $region33: #{tpu_custom_call.1} parent=1 // pred_fallthru
      _
    %v67 = vld [vmem:[#allocation8] sm:$0xff]
    %v68 = vld [vmem:[#allocation8 + $0x8] sm:$0xff]
    %v69 = vld [vmem:[#allocation8 + $0x10] sm:$0xff]
    %v70 = vld [vmem:[#allocation8 + $0x18] sm:$0xff]
    %v71 = vld [vmem:[#allocation8 + $0x20] sm:$0xff]
    %v72 = vld [vmem:[#allocation8 + $0x28] sm:$0xff]
    %v73 = vld [vmem:[#allocation8 + $0x30] sm:$0xff]
    %v74 = vld [vmem:[#allocation8 + $0x38] sm:$0xff]
    %v75 = vld [vmem:[#allocation8 + $0x40] sm:$0xff]
    %v76 = vld [vmem:[#allocation8 + $0x48] sm:$0xff]
    %v77 = vld [vmem:[#allocation8 + $0x50] sm:$0xff]
    %v78 = vld [vmem:[#allocation8 + $0x58] sm:$0xff]
    %v79 = vld [vmem:[#allocation8 + $0x60] sm:$0xff]
    %v80 = vld [vmem:[#allocation8 + $0x68] sm:$0xff]
    %v81 = vld [vmem:[#allocation8 + $0x70] sm:$0xff]
    %v82 = vld [vmem:[#allocation8 + $0x78] sm:$0xff]
    %v83 = vld [vmem:[#allocation8 + $0x80] sm:$0xff]
    %v84 = vld [vmem:[#allocation8 + $0x88] sm:$0xff]
    %v85 = vld [vmem:[#allocation8 + $0x90] sm:$0xff]
    %v86 = vld [vmem:[#allocation8 + $0x98] sm:$0xff]
    %v87 = vld [vmem:[#allocation8 + $0xa0] sm:$0xff]
    %v88 = vld [vmem:[#allocation8 + $0xa8] sm:$0xff]
    %v89 = vld [vmem:[#allocation8 + $0xb0] sm:$0xff]
    %v90 = vld [vmem:[#allocation8 + $0xb8] sm:$0xff]
    %v91 = vld [vmem:[#allocation8 + $0xc0] sm:$0xff]
    %v92 = vld [vmem:[#allocation8 + $0xc8] sm:$0xff]
    %v93 = vld [vmem:[#allocation8 + $0xd0] sm:$0xff]
    %v94 = vld [vmem:[#allocation8 + $0xd8] sm:$0xff]
    %v95 = vld [vmem:[#allocation8 + $0xe0] sm:$0xff]
    %v96 = vld [vmem:[#allocation8 + $0xe8] sm:$0xff]
    %v97 = vld [vmem:[#allocation8 + $0xf0] sm:$0xff]
    %v98 = vld [vmem:[#allocation8 + $0xf8] sm:$0xff]
    %v99 = vld [vmem:[#allocation8 + $0x100] sm:$0xff]
    %v100 = vld [vmem:[#allocation8 + $0x108] sm:$0xff]
    %v101 = vld [vmem:[#allocation8 + $0x110] sm:$0xff]
    %v102 = vld [vmem:[#allocation8 + $0x118] sm:$0xff]
    %v103 = vld [vmem:[#allocation8 + $0x120] sm:$0xff]
    %v104 = vld [vmem:[#allocation8 + $0x128] sm:$0xff]
    %v105 = vld [vmem:[#allocation8 + $0x130] sm:$0xff]
    %v106 = vld [vmem:[#allocation8 + $0x138] sm:$0xff]
    %v107 = vld [vmem:[#allocation8 + $0x140] sm:$0xff]
    %v108 = vld [vmem:[#allocation8 + $0x148] sm:$0xff]
    %v109 = vld [vmem:[#allocation8 + $0x150] sm:$0xff]
    %v110 = vld [vmem:[#allocation8 + $0x158] sm:$0xff]
    %v111 = vld [vmem:[#allocation8 + $0x160] sm:$0xff]
    %v112 = vld [vmem:[#allocation8 + $0x168] sm:$0xff]
    %v113 = vld [vmem:[#allocation8 + $0x170] sm:$0xff]
    %v114 = vld [vmem:[#allocation8 + $0x178] sm:$0xff]
    %v115 = vld [vmem:[%s3] sm:$0x1]
    %v116 = vld [vmem:[#allocation2] sm:$0xff]
    %v117 = vld [vmem:[#allocation3] sm:$0xff]
    %v118 = vld [vmem:[#allocation3 + $0x8] sm:$0xff]
    %v119 = vld [vmem:[#allocation3 + $0x10] sm:$0xff]
    %120 = vmatpush.msra.mxu0 %v112
    %121 = vmatpush.msra.mxu0 %v109
    %122 = vmatpush.msra.mxu0 %v106
    %123 = vmatpush.msra.mxu0 %v103
    %124 = vmatpush.msra.mxu0 %v100
    %125 = vmatpush.msra.mxu0 %v97
    %126 = vmatpush.msra.mxu0 %v94
    %127 = vmatpush.msra.mxu0 %v91
    %128 = vmatpush.msra.mxu0 %v88
    %129 = vmatpush.msra.mxu0 %v85
    %130 = vmatpush.msra.mxu0 %v82
    %131 = vmatpush.msra.mxu0 %v79
    %132 = vmatpush.msra.mxu0 %v76
    %133 = vmatpush.msra.mxu0 %v73
    %134 = vmatpush.msra.mxu0 %v70
    %135 = vmatpush.msra.mxu0 %v67
    %136 = vmatmul.f32.gmra.mxu0 %v116
    %v137 = vpop.f32.mrf.mxu0
    %v138 = vadd.f32 0.0, %v137
    %139 = vdwg.mxu0
    %140 = vmatpush.msra.mxu0 %v113
    %141 = vmatpush.msra.mxu0 %v110
    %142 = vmatpush.msra.mxu0 %v107
    %143 = vmatpush.msra.mxu0 %v104
    %144 = vmatpush.msra.mxu0 %v101
    %145 = vmatpush.msra.mxu0 %v98
    %146 = vmatpush.msra.mxu0 %v95
    %147 = vmatpush.msra.mxu0 %v92
    %148 = vmatpush.msra.mxu0 %v89
    %149 = vmatpush.msra.mxu0 %v86
    %150 = vmatpush.msra.mxu0 %v83
    %151 = vmatpush.msra.mxu0 %v80
    %152 = vmatpush.msra.mxu0 %v77
    %153 = vmatpush.msra.mxu0 %v74
    %154 = vmatpush.msra.mxu0 %v71
    %155 = vmatpush.msra.mxu0 %v68
    %156 = vmatmul.f32.gmra.mxu0 %v116
    %v157 = vpop.f32.mrf.mxu0
    %v158 = vadd.f32 0.0, %v157
    %159 = vdwg.mxu0
    %160 = vmatpush.msra.mxu0 %v114
    %161 = vmatpush.msra.mxu0 %v111
    %162 = vmatpush.msra.mxu0 %v108
    %163 = vmatpush.msra.mxu0 %v105
    %164 = vmatpush.msra.mxu0 %v102
    %165 = vmatpush.msra.mxu0 %v99
    %166 = vmatpush.msra.mxu0 %v96
    %167 = vmatpush.msra.mxu0 %v93
    %168 = vmatpush.msra.mxu0 %v90
    %169 = vmatpush.msra.mxu0 %v87
    %170 = vmatpush.msra.mxu0 %v84
    %171 = vmatpush.msra.mxu0 %v81
    %172 = vmatpush.msra.mxu0 %v78
    %173 = vmatpush.msra.mxu0 %v75
    %174 = vmatpush.msra.mxu0 %v72
    %175 = vmatpush.msra.mxu0 %v69
    %176 = vmatmul.f32.gmra.mxu0 %v116
    %v177 = vpop.f32.mrf.mxu0
    %v178 = vadd.f32 0.0, %v177
    %179 = vdwg.mxu0
    %v180 = vadd.f32 %v117, %v138
    %v181 = vmul.f32 %v180, 0.5
    %v182 = vtanh.pop %v181
    %v183 = vadd.f32 %v182, 1.0
    %v184 = vmul.f32 %v183, 0.5
    %v185 = vadd.f32 %v118, %v158
    %v186 = vmul.f32 %v185, 0.5
    %v187 = vtanh.pop %v186
    %v188 = vadd.f32 %v187, 1.0
    %v189 = vmul.f32 %v188, 0.5
    %v191 = vperm.slane %v115, 0
    %v193 = vadd.f32 %v178, %v191
    %v194 = vmul.f32 %v184, %v193
    %v195 = vadd.f32 %v119, %v194
    %v196 = vtanh.pop %v195
    %v197 = vsub.f32 %v116, %v196
    %v198 = vmul.f32 %v189, %v197
    %v199 = vadd.f32 %v196, %v198
    %200 = vst [vmem:[#allocation9] sm:$0xff] %v199
    %201 = vst [vmem:[#allocation2] sm:$0xff] %v199
    // Predicated region
    $region34: #{tpu_custom_call.1} parent=1 // pred_check
      _
    $region35: #{tpu_custom_call.1} parent=1 // pred_check_branch
      %203 = sbr.rel (0) target = $region37
    $region36: #{tpu_custom_call.1} parent=1 // pred_region
      %205 = vsyncadd [#allocation5], 0
      %s207 = sshll.u32 [#allocation9], 4
      %s208 = int_to_ptr.vmem [resolvable:$true] %s207
      %s209 = sshll.u32 %s4, 4
      %s210 = int_to_ptr.hbm [resolvable:$true] %s209
      %212 = dma.vmem_to_hbm [thread:$0]  %s208, 128, %s210, [#allocation5]
    $region37: #{tpu_custom_call.1} parent=1 // pred_fallthru
      _
    // Predicated region
    $region38: #{tpu_custom_call.1} parent=1 // pred_check
      _
    $region39: #{tpu_custom_call.1} parent=1 // pred_check_branch
      %214 = sbr.rel (0) target = $region41
    $region40: #{tpu_custom_call.1} parent=1 // pred_region
      %216 = dma.done [#allocation5], 128
    $region41: #{tpu_custom_call.1} parent=1 // pred_fallthru
      _
    %217 = vsyncpa [#allocation4], 1
    %218 = vsyncpa [#allocation7], 1
    %219 = vsyncpa [#allocation5], 1

</llo_original>
